<compile_context>
chip_gen: v6e
topology: v6e:2x2x1
jax: 0.10.0
libtpu: 0.0.40
codegen_flags: <defaults>
</compile_context>

<pallas_src>
import jax
import jax.numpy as jnp
from jax.experimental import pallas as pl
from jax.experimental.pallas import tpu as pltpu


def _round_up(x, m):
    return (x + m - 1) // m * m


def _pick_block_h(hidden, target=512):
    """Largest MXU-friendly hidden tile (multiple of 128) dividing `hidden`."""
    if hidden <= target:
        return hidden
    for bh in (target, 512, 256, 128):
        if bh % 128 == 0 and hidden % bh == 0:
            return bh
    return hidden  # fall back: keep the whole hidden dim resident


def _gelu_tanh(x):
    # tanh-approximation GELU, computed in x.dtype (bf16 on v6e/v7x, f32 on
    # v5e).  tanh goes to the EUP; the rest is a handful of VALU ops.
    inner = 0.7978845608028654 * (x + 0.044715 * x * x * x)
    return 0.5 * x * (1.0 + jnp.tanh(inner))


# ----------------------------------------------------------------------------
# Kernel: grid = (M tiles, hidden tiles).  Accumulate into a resident f32
# scratch; write the output block only on the last hidden step.
# ----------------------------------------------------------------------------
def _make_ffn_kernel(gelu_dtype):
    def kernel(x_ref, w1_ref, b1_ref, w2_ref, b2_ref, o_ref, acc_ref):
        hk = pl.program_id(1)

        @pl.when(hk == 0)
        def _init():
            acc_ref[...] = jnp.zeros_like(acc_ref)

        # partial Linear(dim -> bh): bf16 MXU matmul, f32 accumulation
        h = jnp.dot(x_ref[...], w1_ref[...],
                    preferred_element_type=jnp.float32)
        h = h.astype(gelu_dtype) + b1_ref[...].astype(gelu_dtype)
        h = _gelu_tanh(h)

        # partial Linear(bh -> dim), accumulated over hidden tiles
        acc_ref[...] += jnp.dot(h.astype(jnp.bfloat16), w2_ref[...],
                                preferred_element_type=jnp.float32)

        @pl.when(hk == pl.num_programs(1) - 1)
        def _finalize():
            o_ref[...] = (acc_ref[...] + b2_ref[...]).astype(o_ref.dtype)

        # TODO(synk): dropout > 0 (training mode) would need pltpu.prng_*
        # masking; the module is exercised with dropout=0.0 (eval) == identity.
    return kernel


def feed_forward(x, params, *, block_m=512, block_h=512):
    """x: (B, N, dim) f32 -> (B, N, dim) f32  (Linear -> GELU -> Linear)."""
    B, N, dim = x.shape
    w1, b1, w2, b2 = params["w1"], params["b1"], params["w2"], params["b2"]
    hidden = w1.shape[1]

    # ---- fold (B, N) into one M axis; pad rows/features to tile multiples --
    M = B * N
    bm = min(block_m, _round_up(M, 16))
    Mp = _round_up(M, bm)
    dimp = _round_up(dim, 128)          # lane-dense feature dim (CrossViT: 96/192/...)
    bh = _pick_block_h(hidden, block_h)
    GM, GH = Mp // bm, hidden // bh

    x2 = x.reshape(M, dim).astype(jnp.bfloat16)          # bf16 activations in
    if Mp != M or dimp != dim:
        x2 = jnp.pad(x2, ((0, Mp - M), (0, dimp - dim)))

    w1p = w1.astype(jnp.bfloat16)
    w2p = w2.astype(jnp.bfloat16)
    b2p = b2
    if dimp != dim:
        w1p = jnp.pad(w1p, ((0, dimp - dim), (0, 0)))     # extra x cols are 0
        w2p = jnp.pad(w2p, ((0, 0), (0, dimp - dim)))
        b2p = jnp.pad(b2, ((0, 0), (0, dimp - dim)))

    # GELU compute dtype: bf16 on bf16-capable VPUs (v6e/v7x), f32 on v5e/older.
    try:
        kind = jax.devices()[0].device_kind.lower()
    except Exception:  # pragma: no cover
        kind = ""
    old_vpu = any(t in kind for t in ("v2", "v3", "v4", "v5"))
    gelu_dtype = jnp.float32 if old_vpu else jnp.bfloat16

    cost = pl.CostEstimate(
        flops=4 * Mp * dimp * hidden,                     # two matmuls
        transcendentals=Mp * hidden,                      # tanh in GELU
        bytes_accessed=(Mp * dimp) * (2 + 4)              # x in bf16, out f32
        + GM * (w1p.size + w2p.size) * 2                  # weights re-streamed per M tile
        + GM * (b1.size + b2p.size) * 4,
    )

    out = pl.pallas_call(
        _make_ffn_kernel(gelu_dtype),
        out_shape=jax.ShapeDtypeStruct((Mp, dimp), jnp.float32),
        grid_spec=pltpu.PrefetchScalarGridSpec(
            num_scalar_prefetch=0,
            grid=(GM, GH),
            in_specs=[
                pl.BlockSpec((bm, dimp), lambda i, hk: (i, 0)),    # x tile
                pl.BlockSpec((dimp, bh), lambda i, hk: (0, hk)),   # w1 slice
                pl.BlockSpec((1, bh),    lambda i, hk: (0, hk)),   # b1 slice
                pl.BlockSpec((bh, dimp), lambda i, hk: (hk, 0)),   # w2 slice
                pl.BlockSpec((1, dimp),  lambda i, hk: (0, 0)),    # b2
            ],
            out_specs=pl.BlockSpec((bm, dimp), lambda i, hk: (i, 0)),
            scratch_shapes=[pltpu.VMEM((bm, dimp), jnp.float32)],
        ),
        compiler_params=pltpu.CompilerParams(
            dimension_semantics=("parallel", "arbitrary")),
        cost_estimate=cost,
    )(x2, w1p, b1, w2p, b2p)

    if dimp != dim:
        out = out[:, :dim]
    return out[:M].reshape(B, N, dim)


# ----------------------------------------------------------------------------
# Deterministic parameter init (mirrors nn.Linear shapes; weights stored as
# (in_features, out_features) so the kernel computes x @ W + b).
# ----------------------------------------------------------------------------
def init_feed_forward(key, dim, hidden_dim):
    k1, k2, k3, k4 = jax.random.split(key, 4)
    return {
        "w1": (jax.random.normal(k1, (dim, hidden_dim), jnp.float32)
               * 0.02).astype(jnp.bfloat16),
        "b1": jax.random.normal(k2, (1, hidden_dim), jnp.float32) * 0.02,
        "w2": (jax.random.normal(k3, (hidden_dim, dim), jnp.float32)
               * 0.02).astype(jnp.bfloat16),
        "b2": jax.random.normal(k4, (1, dim), jnp.float32) * 0.02,
    }


# ----------------------------------------------------------------------------
# Pure-JAX reference (f32, exact erf GELU — PyTorch nn.GELU() default).
# ----------------------------------------------------------------------------
def _ref_feed_forward(x, params):
    w1 = params["w1"].astype(jnp.float32)
    w2 = params["w2"].astype(jnp.float32)
    h = x @ w1 + params["b1"]
    h = jax.nn.gelu(h, approximate=False)
    return h @ w2 + params["b2"]


if __name__ == "__main__":
    # small shapes consistent with the module's forward: (batch, seq, dim)
    B, N = 2, 8
    dim, hidden_dim = 32, 64
    # dropout = 0.0 -> identity (eval mode)

    key = jax.random.PRNGKey(0)
    kx, kp = jax.random.split(key)
    x = jax.random.normal(kx, (B, N, dim), jnp.float32)
    params = init_feed_forward(kp, dim, hidden_dim)

    out = feed_forward(x, params)
    out = jax.block_until_ready(out)

    ref = _ref_feed_forward(x, params)
    assert out.shape == (B, N, dim)
    max_err = float(jnp.max(jnp.abs(out - ref)))
    assert jnp.allclose(out, ref, atol=2e-2, rtol=2e-2), \
        f"mismatch, max abs err {max_err}"

    print("KERNEL_OK")
</pallas_src>

<mosaic_0001>
module attributes {stable_mosaic.version = 11 : i64} {
  func.func @kernel(%arg0: i32, %arg1: i32, %arg2: memref<16x128xbf16, #tpu.memory_space<vmem>>, %arg3: memref<128x64xbf16, #tpu.memory_space<vmem>>, %arg4: memref<1x64xf32, #tpu.memory_space<vmem>>, %arg5: memref<64x128xbf16, #tpu.memory_space<vmem>>, %arg6: memref<1x128xf32, #tpu.memory_space<vmem>>, %arg7: memref<16x128xf32, #tpu.memory_space<vmem>>, %arg8: memref<16x128xf32, #tpu.memory_space<vmem>>) attributes {dimension_semantics = [#tpu.dimension_semantics<parallel>, #tpu.dimension_semantics<arbitrary>], iteration_bounds = array<i64: 1, 1>, scalar_prefetch = 0 : i64, scratch_operands = 1 : i64, tpu.core_type = #tpu.core_type<tc>, window_params = [{transform_indices = @transform_0, window_bounds = array<i64: 16, 128>}, {transform_indices = @transform_1, window_bounds = array<i64: 128, 64>}, {transform_indices = @transform_2, window_bounds = array<i64: 1, 64>}, {transform_indices = @transform_3, window_bounds = array<i64: 64, 128>}, {pipeline_mode = #tpu.pipeline_mode<synchronous>, transform_indices = @transform_4, window_bounds = array<i64: 1, 128>}, {transform_indices = @transform_5, window_bounds = array<i64: 16, 128>}]} {
    %c0_i32 = arith.constant 0 : i32
    %0 = arith.cmpi eq, %arg1, %c0_i32 : i32
    %1 = arith.extui %0 : i1 to i32
    %c0_i32_0 = arith.constant 0 : i32
    %2 = arith.cmpi ne, %1, %c0_i32_0 : i32
    scf.if %2 {
      %cst_19 = arith.constant 0.000000e+00 : f32
      %32 = vector.broadcast %cst_19 : f32 to vector<16x128xf32>
      %c0_20 = arith.constant 0 : index
      %c0_21 = arith.constant 0 : index
      %33 = vector.load %arg8[%c0_20, %c0_21] : memref<16x128xf32, #tpu.memory_space<vmem>>, vector<16x128xf32>
      tpu.vector_store %arg8[%c0_20, %c0_21], %32 {strides = array<i32>} : memref<16x128xf32, #tpu.memory_space<vmem>>, vector<16x128xf32>,
    } else {
    }
    %c0 = arith.constant 0 : index
    %c0_1 = arith.constant 0 : index
    %3 = vector.load %arg2[%c0, %c0_1] : memref<16x128xbf16, #tpu.memory_space<vmem>>, vector<16x128xbf16>
    %c0_2 = arith.constant 0 : index
    %c0_3 = arith.constant 0 : index
    %4 = vector.load %arg3[%c0_2, %c0_3] : memref<128x64xbf16, #tpu.memory_space<vmem>>, vector<128x64xbf16>
    %cst = arith.constant dense<0.000000e+00> : vector<16x64xf32>
    %5 = tpu.matmul %3, %4, %cst {dimension_numbers = #tpu.dot_dimension_numbers<[1], [0], [0], [1], [0, 0, 1, 1], [], []>} : vector<16x128xbf16>, vector<128x64xbf16>, vector<16x64xf32> -> vector<16x64xf32>
    %6 = arith.truncf %5 : vector<16x64xf32> to vector<16x64xbf16>
    %c0_4 = arith.constant 0 : index
    %c0_5 = arith.constant 0 : index
    %7 = vector.load %arg4[%c0_4, %c0_5] : memref<1x64xf32, #tpu.memory_space<vmem>>, vector<1x64xf32>
    %8 = arith.truncf %7 : vector<1x64xf32> to vector<1x64xbf16>
    %9 = vector.broadcast %8 : vector<1x64xbf16> to vector<16x64xbf16>
    %10 = arith.addf %6, %9 : vector<16x64xbf16>
    %cst_6 = arith.constant 4.467770e-02 : bf16
    %11 = vector.broadcast %cst_6 : bf16 to vector<16x64xbf16>
    %12 = arith.mulf %11, %10 : vector<16x64xbf16>
    %13 = arith.mulf %12, %10 : vector<16x64xbf16>
    %14 = arith.mulf %13, %10 : vector<16x64xbf16>
    %15 = arith.addf %10, %14 : vector<16x64xbf16>
    %cst_7 = arith.constant 7.968750e-01 : bf16
    %16 = vector.broadcast %cst_7 : bf16 to vector<16x64xbf16>
    %17 = arith.mulf %16, %15 : vector<16x64xbf16>
    %cst_8 = arith.constant 5.000000e-01 : bf16
    %18 = vector.broadcast %cst_8 : bf16 to vector<16x64xbf16>
    %19 = arith.mulf %18, %10 : vector<16x64xbf16>
    %20 = math.tanh %17 : vector<16x64xbf16>
    %cst_9 = arith.constant 1.000000e+00 : bf16
    %21 = vector.broadcast %cst_9 : bf16 to vector<16x64xbf16>
    %22 = arith.addf %21, %20 : vector<16x64xbf16>
    %23 = arith.mulf %19, %22 : vector<16x64xbf16>
    %c0_10 = arith.constant 0 : index
    %c0_11 = arith.constant 0 : index
    %24 = vector.load %arg8[%c0_10, %c0_11] : memref<16x128xf32, #tpu.memory_space<vmem>>, vector<16x128xf32>
    %c0_12 = arith.constant 0 : index
    %c0_13 = arith.constant 0 : index
    %25 = vector.load %arg5[%c0_12, %c0_13] : memref<64x128xbf16, #tpu.memory_space<vmem>>, vector<64x128xbf16>
    %cst_14 = arith.constant dense<0.000000e+00> : vector<16x128xf32>
    %26 = tpu.matmul %23, %25, %cst_14 {dimension_numbers = #tpu.dot_dimension_numbers<[1], [0], [0], [1], [0, 0, 1, 1], [], []>} : vector<16x64xbf16>, vector<64x128xbf16>, vector<16x128xf32> -> vector<16x128xf32>
    %27 = arith.addf %24, %26 : vector<16x128xf32>
    %c0_15 = arith.constant 0 : index
    %c0_16 = arith.constant 0 : index
    %28 = vector.load %arg8[%c0_15, %c0_16] : memref<16x128xf32, #tpu.memory_space<vmem>>, vector<16x128xf32>
    tpu.vector_store %arg8[%c0_15, %c0_16], %27 {strides = array<i32>} : memref<16x128xf32, #tpu.memory_space<vmem>>, vector<16x128xf32>,
    %c0_i32_17 = arith.constant 0 : i32
    %29 = arith.cmpi eq, %arg1, %c0_i32_17 : i32
    %30 = arith.extui %29 : i1 to i32
    %c0_i32_18 = arith.constant 0 : i32
    %31 = arith.cmpi ne, %30, %c0_i32_18 : i32
    scf.if %31 {
      %c0_19 = arith.constant 0 : index
      %c0_20 = arith.constant 0 : index
      %32 = vector.load %arg8[%c0_19, %c0_20] : memref<16x128xf32, #tpu.memory_space<vmem>>, vector<16x128xf32>
      %c0_21 = arith.constant 0 : index
      %c0_22 = arith.constant 0 : index
      %33 = vector.load %arg6[%c0_21, %c0_22] : memref<1x128xf32, #tpu.memory_space<vmem>>, vector<1x128xf32>
      %34 = vector.broadcast %33 : vector<1x128xf32> to vector<16x128xf32>
      %35 = arith.addf %32, %34 : vector<16x128xf32>
      %c0_23 = arith.constant 0 : index
      %c0_24 = arith.constant 0 : index
      %36 = vector.load %arg7[%c0_23, %c0_24] : memref<16x128xf32, #tpu.memory_space<vmem>>, vector<16x128xf32>
      tpu.vector_store %arg7[%c0_23, %c0_24], %35 {strides = array<i32>} : memref<16x128xf32, #tpu.memory_space<vmem>>, vector<16x128xf32>,
    } else {
    }
    return
  }
  func.func @transform_0(%arg0: i32, %arg1: i32) -> (i32, i32) {
    %c0_i32 = arith.constant 0 : i32
    %c0_i32_0 = arith.constant 0 : i32
    return %arg0, %c0_i32 : i32, i32
  }
  func.func @transform_1(%arg0: i32, %arg1: i32) -> (i32, i32) {
    %c0_i32 = arith.constant 0 : i32
    %c0_i32_0 = arith.constant 0 : i32
    return %c0_i32, %arg1 : i32, i32
  }
  func.func @transform_2(%arg0: i32, %arg1: i32) -> (i32, i32) {
    %c0_i32 = arith.constant 0 : i32
    %c0_i32_0 = arith.constant 0 : i32
    return %c0_i32, %arg1 : i32, i32
  }
  func.func @transform_3(%arg0: i32, %arg1: i32) -> (i32, i32) {
    %c0_i32 = arith.constant 0 : i32
    %c0_i32_0 = arith.constant 0 : i32
    return %arg1, %c0_i32 : i32, i32
  }
  func.func @transform_4(%arg0: i32, %arg1: i32) -> (i32, i32) {
    %c0_i32 = arith.constant 0 : i32
    %c0_i32_0 = arith.constant 0 : i32
    %c0_i32_1 = arith.constant 0 : i32
    return %c0_i32, %c0_i32_0 : i32, i32
  }
  func.func @transform_5(%arg0: i32, %arg1: i32) -> (i32, i32) {
    %c0_i32 = arith.constant 0 : i32
    %c0_i32_0 = arith.constant 0 : i32
    return %arg0, %c0_i32 : i32, i32
  }
}

</mosaic_0001>

<llo_original>
// kernel: tpu_custom_call.1
$region0: #{tpu_custom_call.1}
  #allocation0 [shape = 'u32[]', space=smem, size = 0x4, offset = 0x4, fixed_abs, tag = 'smem constant byte address 0x4 - core index']
  #allocation1 [shape = 'u32[144,128]{1,0:T(1,128)}', space=vmem, size = 0x12000, scoped, tag = 'internal scratch']
  #allocation2 [shape = 'f32[16,128]{1,0:T(8,128)}', space=vmem, size = 0x2000, scoped, tag = 'scratch operand']
  %s0 = inlined_call_operand.vmem [shape: bf16[16,128], index: 0, kind: input, shape index: {}]
  %s1 = inlined_call_operand.vmem [shape: bf16[128,64], index: 1, kind: input, shape index: {}]
  %s2 = inlined_call_operand.vmem [shape: f32[1,64], index: 2, kind: input, shape index: {}]
  %s3 = inlined_call_operand.vmem [shape: bf16[64,128], index: 3, kind: input, shape index: {}]
  %s4 = inlined_call_operand.vmem [shape: f32[1,128], index: 4, kind: input, shape index: {}]
  %s5 = inlined_call_operand.hbm [shape: f32[16,128], index: 5, kind: output, shape index: {}]
  %s6 = sld [smem:[#allocation0]]
  $region38: #{tpu_custom_call.1} parent=0
    _
  %s8 = ssub.s32 1, %s6
  %s9 = scalar_select 0, %s8, %s6
  $region1: #{tpu_custom_call.1} parent=0
    #allocation3 [shape = 'u8[8192]{0}', space=vmem, size = 0x2000, scoped, tag = 'output window, operand 0, single buffered']
    #allocation4 [shape = 's32[1]{0}', space=sflag, size = 0x4, scoped, tag = 'scoped memory for tpu_custom_call.1']
    %10 = vsyncpa [#allocation4], 0
    // Predicated region
    $region2: #{tpu_custom_call.1} parent=1 // pred_check
      _
    $region3: #{tpu_custom_call.1} parent=1 // pred_check_branch
      %12 = sbr.rel (0) target = $region5
    $region4: #{tpu_custom_call.1} parent=1 // pred_region
      _
    $region5: #{tpu_custom_call.1} parent=1 // pred_fallthru
      _
    // Predicated region
    $region6: #{tpu_custom_call.1} parent=1 // pred_check
      _
    $region7: #{tpu_custom_call.1} parent=1 // pred_check_branch
      %14 = sbr.rel (0) target = $region9
    $region8: #{tpu_custom_call.1} parent=1 // pred_region
      _
    $region9: #{tpu_custom_call.1} parent=1 // pred_fallthru
      _
    // Predicated region
    $region10: #{tpu_custom_call.1} parent=1 // pred_check
      _
    $region11: #{tpu_custom_call.1} parent=1 // pred_check_branch
      %16 = sbr.rel (0) target = $region13
    $region12: #{tpu_custom_call.1} parent=1 // pred_region
      _
    $region13: #{tpu_custom_call.1} parent=1 // pred_fallthru
      _
    // Predicated region
    $region14: #{tpu_custom_call.1} parent=1 // pred_check
      _
    $region15: #{tpu_custom_call.1} parent=1 // pred_check_branch
      %18 = sbr.rel (0) target = $region17
    $region16: #{tpu_custom_call.1} parent=1 // pred_region
      _
    $region17: #{tpu_custom_call.1} parent=1 // pred_fallthru
      _
    // Predicated region
    $region18: #{tpu_custom_call.1} parent=1 // pred_check
      _
    $region19: #{tpu_custom_call.1} parent=1 // pred_check_branch
      %20 = sbr.rel (0) target = $region21
    $region20: #{tpu_custom_call.1} parent=1 // pred_region
      _
    $region21: #{tpu_custom_call.1} parent=1 // pred_fallthru
      _
    %p26 = scmp.eq.s32.totalorder 0, 0
    // Predicated region
    $region22: #{tpu_custom_call.1} parent=1 // pred_check
      %p27 = pneg %p26
    $region23: #{tpu_custom_call.1} parent=1 // pred_check_branch
      %29 = sbr.rel (%p27) target = $region25
    $region24: #{tpu_custom_call.1} parent=1 // pred_region
      %30 = vst [vmem:[#allocation2] sm:$0xff] 0.0
      %31 = vst [vmem:[#allocation2 + $0x8] sm:$0xff] 0.0
    $region25: #{tpu_custom_call.1} parent=1 // pred_fallthru
      _
    %v32 = vld [vmem:[%s0] sm:$0xf]
    %v33 = vld [vmem:[%s0 + $0x4] sm:$0xf]
    %v34 = vld [vmem:[%s1] sm:$0xf]
    %v35 = vld [vmem:[%s1 + $0x4] sm:$0xf]
    %v36 = vld [vmem:[%s1 + $0x8] sm:$0xf]
    %v37 = vld [vmem:[%s1 + $0xc] sm:$0xf]
    %v38 = vld [vmem:[%s1 + $0x10] sm:$0xf]
    %v39 = vld [vmem:[%s1 + $0x14] sm:$0xf]
    %v40 = vld [vmem:[%s1 + $0x18] sm:$0xf]
    %v41 = vld [vmem:[%s1 + $0x1c] sm:$0xf]
    %v42 = vld [vmem:[%s1 + $0x20] sm:$0xf]
    %v43 = vld [vmem:[%s1 + $0x24] sm:$0xf]
    %v44 = vld [vmem:[%s1 + $0x28] sm:$0xf]
    %v45 = vld [vmem:[%s1 + $0x2c] sm:$0xf]
    %v46 = vld [vmem:[%s1 + $0x30] sm:$0xf]
    %v47 = vld [vmem:[%s1 + $0x34] sm:$0xf]
    %v48 = vld [vmem:[%s1 + $0x38] sm:$0xf]
    %v49 = vld [vmem:[%s1 + $0x3c] sm:$0xf]
    %v52 = vunpack.c.l.b16 %v32
    %v53 = vunpack.c.l.b16 %v33
    %v54 = vpack.c.b16 %v53, %v52
    %v72 = vunpack.c.l.b16 %v34
    %v73 = vunpack.c.l.b16 %v35
    %v74 = vunpack.c.l.b16 %v36
    %v75 = vunpack.c.l.b16 %v37
    %v76 = vunpack.c.l.b16 %v38
    %v77 = vunpack.c.l.b16 %v39
    %v78 = vunpack.c.l.b16 %v40
    %v79 = vunpack.c.l.b16 %v41
    %v80 = vunpack.c.l.b16 %v42
    %v81 = vunpack.c.l.b16 %v43
    %v82 = vunpack.c.l.b16 %v44
    %v83 = vunpack.c.l.b16 %v45
    %v84 = vunpack.c.l.b16 %v46
    %v85 = vunpack.c.l.b16 %v47
    %v86 = vunpack.c.l.b16 %v48
    %v87 = vunpack.c.l.b16 %v49
    %v88 = vpack.c.b16 %v73, %v72
    %v89 = vpack.c.b16 %v75, %v74
    %v90 = vpack.c.b16 %v77, %v76
    %v91 = vpack.c.b16 %v79, %v78
    %v92 = vpack.c.b16 %v81, %v80
    %v93 = vpack.c.b16 %v83, %v82
    %v94 = vpack.c.b16 %v85, %v84
    %v95 = vpack.c.b16 %v87, %v86
    %104 = vmatprep.subr.bf16.mxu0 0
    %105 = vmatpush1.bf16.msra.mxu0 %v95
    %106 = vmatprep.subr.bf16.mxu0 0
    %107 = vmatpush1.bf16.msra.mxu0 %v94
    %108 = vmatprep.subr.bf16.mxu0 0
    %109 = vmatpush1.bf16.msra.mxu0 %v93
    %110 = vmatprep.subr.bf16.mxu0 0
    %111 = vmatpush1.bf16.msra.mxu0 %v92
    %112 = vmatprep.subr.bf16.mxu0 0
    %113 = vmatpush1.bf16.msra.mxu0 %v91
    %114 = vmatprep.subr.bf16.mxu0 0
    %115 = vmatpush1.bf16.msra.mxu0 %v90
    %116 = vmatprep.subr.bf16.mxu0 0
    %117 = vmatpush1.bf16.msra.mxu0 %v89
    %118 = vmatprep.subr.bf16.mxu0 0
    %119 = vmatpush1.bf16.msra.mxu0 %v88
    %120 = vmatprep.subr.bf16.mxu0 0
    %121 = vmatpush2.bf16.msra.mxu0 0
    %122 = vmatprep.subr.bf16.mxu0 0
    %123 = vmatpush2.bf16.msra.mxu0 0
    %124 = vmatprep.subr.bf16.mxu0 0
    %125 = vmatpush2.bf16.msra.mxu0 0
    %126 = vmatprep.subr.bf16.mxu0 0
    %127 = vmatpush2.bf16.msra.mxu0 0
    %128 = vmatprep.subr.bf16.mxu0 0
    %129 = vmatpush2.bf16.msra.mxu0 0
    %130 = vmatprep.subr.bf16.mxu0 0
    %131 = vmatpush2.bf16.msra.mxu0 0
    %132 = vmatprep.subr.bf16.mxu0 0
    %133 = vmatpush2.bf16.msra.mxu0 0
    %134 = vmatprep.subr.bf16.mxu0 0
    %135 = vmatpush2.bf16.msra.mxu0 0
    %136 = vmatprep.mubr.bf16.mxu0 0
    %137 = vmatmul.mubr.bf16.gmra.mxu0 %v54
    %v138 = vpop.f32.mrf.mxu0
    %v139 = vadd.f32 0.0, %v138
    %v140 = vpop.f32.mrf.mxu0
    %v141 = vpop.f32.mrf.mxu0
    %v142 = vadd.f32 0.0, %v141
    %v143 = vpop.f32.mrf.mxu0
    %144 = vdwg.mxu0
    %v145 = vpack.c.bf16 %v142, %v139
    %v146 = vld [vmem:[%s2] sm:$0x1]
    %v147 = vpack.c.bf16 %v146, %v146
    %v149 = vpack.i.b16 %v147, %v147
    %v151 = vlaneseq
    %v152 = vshrl.u32 %v151, 7
    %v153 = vsub.s32 0, %v152
    %v154 = vrot.slane %v149, %v153
    %v155 = vadd.bf16 %v145, %v154
    %v156 = vmul.bf16 %v155, 1027030327
    %v157 = vmul.bf16 %v156, %v155
    %v158 = vmul.bf16 %v157, %v155
    %v159 = vadd.bf16 %v155, %v158
    %v160 = vmul.bf16 %v159, 1061961548
    %v161 = vmul.bf16 %v155, 1056980736
    %v162 = vtanh.bf16.pop %v160
    %v163 = vadd.bf16 %v162, 1065369472
    %v164 = vmul.bf16 %v161, %v163
    %v165 = vld [vmem:[#allocation2] sm:$0xff]
    %v166 = vld [vmem:[#allocation2 + $0x8] sm:$0xff]
    %v167 = vld [vmem:[%s3] sm:$0xf]
    %v168 = vld [vmem:[%s3 + $0x4] sm:$0xf]
    %v169 = vld [vmem:[%s3 + $0x8] sm:$0xf]
    %v170 = vld [vmem:[%s3 + $0xc] sm:$0xf]
    %v171 = vld [vmem:[%s3 + $0x10] sm:$0xf]
    %v172 = vld [vmem:[%s3 + $0x14] sm:$0xf]
    %v173 = vld [vmem:[%s3 + $0x18] sm:$0xf]
    %v174 = vld [vmem:[%s3 + $0x1c] sm:$0xf]
    %v183 = vunpack.c.l.b16 %v167
    %v184 = vunpack.c.l.b16 %v168
    %v185 = vunpack.c.l.b16 %v169
    %v186 = vunpack.c.l.b16 %v170
    %v187 = vunpack.c.l.b16 %v171
    %v188 = vunpack.c.l.b16 %v172
    %v189 = vunpack.c.l.b16 %v173
    %v190 = vunpack.c.l.b16 %v174
    %v191 = vpack.c.b16 %v184, %v183
    %v192 = vpack.c.b16 %v186, %v185
    %v193 = vpack.c.b16 %v188, %v187
    %v194 = vpack.c.b16 %v190, %v189
    %vm199 = vcmask 523264
    %v201 = vsel %vm199, %v164, 0
    %203 = vmatprep.subr.bf16.mxu0 0
    %204 = vmatpush1.bf16.msra.mxu0 0
    %205 = vmatprep.subr.bf16.mxu0 0
    %206 = vmatpush1.bf16.msra.mxu0 0
    %207 = vmatprep.subr.bf16.mxu0 0
    %208 = vmatpush1.bf16.msra.mxu0 0
    %209 = vmatprep.subr.bf16.mxu0 0
    %210 = vmatpush1.bf16.msra.mxu0 0
    %211 = vmatprep.subr.bf16.mxu0 0
    %212 = vmatpush1.bf16.msra.mxu0 %v194
    %213 = vmatprep.subr.bf16.mxu0 0
    %214 = vmatpush1.bf16.msra.mxu0 %v193
    %215 = vmatprep.subr.bf16.mxu0 0
    %216 = vmatpush1.bf16.msra.mxu0 %v192
    %217 = vmatprep.subr.bf16.mxu0 0
    %218 = vmatpush1.bf16.msra.mxu0 %v191
    %219 = vmatprep.subr.bf16.mxu0 0
    %220 = vmatpush2.bf16.msra.mxu0 0
    %221 = vmatprep.subr.bf16.mxu0 0
    %222 = vmatpush2.bf16.msra.mxu0 0
    %223 = vmatprep.subr.bf16.mxu0 0
    %224 = vmatpush2.bf16.msra.mxu0 0
    %225 = vmatprep.subr.bf16.mxu0 0
    %226 = vmatpush2.bf16.msra.mxu0 0
    %227 = vmatprep.subr.bf16.mxu0 0
    %228 = vmatpush2.bf16.msra.mxu0 0
    %229 = vmatprep.subr.bf16.mxu0 0
    %230 = vmatpush2.bf16.msra.mxu0 0
    %231 = vmatprep.subr.bf16.mxu0 0
    %232 = vmatpush2.bf16.msra.mxu0 0
    %233 = vmatprep.subr.bf16.mxu0 0
    %234 = vmatpush2.bf16.msra.mxu0 0
    %235 = vmatprep.mubr.bf16.mxu0 0
    %236 = vmatmul.mubr.bf16.gmra.mxu0 %v201
    %v237 = vpop.f32.mrf.mxu0
    %v238 = vadd.f32 0.0, %v237
    %v239 = vpop.f32.mrf.mxu0
    %v240 = vpop.f32.mrf.mxu0
    %v241 = vadd.f32 0.0, %v240
    %v242 = vpop.f32.mrf.mxu0
    %243 = vdwg.mxu0
    %v244 = vadd.f32 %v165, %v238
    %v245 = vadd.f32 %v166, %v241
    %246 = vst [vmem:[#allocation2] sm:$0xff] %v244
    %247 = vst [vmem:[#allocation2 + $0x8] sm:$0xff] %v245
    // Predicated region
    $region26: #{tpu_custom_call.1} parent=1 // pred_check
      %p248 = pneg %p26
    $region27: #{tpu_custom_call.1} parent=1 // pred_check_branch
      %250 = sbr.rel (%p248) target = $region29
    $region28: #{tpu_custom_call.1} parent=1 // pred_region
      %v251 = vld [vmem:[#allocation2] sm:$0xff]
      %v252 = vld [vmem:[#allocation2 + $0x8] sm:$0xff]
      %v253 = vld [vmem:[%s4] sm:$0x1]
      %v255 = vlaneseq
      %v256 = vshrl.u32 %v255, 7
      %v257 = vsub.s32 0, %v256
      %v258 = vrot.slane %v253, %v257
      %v260 = vadd.f32 %v251, %v258
      %v261 = vadd.f32 %v252, %v258
      %262 = vst [vmem:[#allocation3] sm:$0xff] %v260
      %263 = vst [vmem:[#allocation3 + $0x8] sm:$0xff] %v261
    $region29: #{tpu_custom_call.1} parent=1 // pred_fallthru
      _
    // Predicated region
    $region30: #{tpu_custom_call.1} parent=1 // pred_check
      _
    $region31: #{tpu_custom_call.1} parent=1 // pred_check_branch
      %265 = sbr.rel (0) target = $region33
    $region32: #{tpu_custom_call.1} parent=1 // pred_region
      %s267 = ssub.s32 256, 256
      %268 = vsyncadd [#allocation4], %s267
      %s269 = sshll.u32 [#allocation3], 4
      %s270 = int_to_ptr.vmem [resolvable:$true] %s269
      %275 = dma.vmem_to_hbm [thread:$0]  %s270, 256, %s5, [#allocation4], 128, 128, 8
    $region33: #{tpu_custom_call.1} parent=1 // pred_fallthru
      _
    // Predicated region
    $region34: #{tpu_custom_call.1} parent=1 // pred_check
      _
    $region35: #{tpu_custom_call.1} parent=1 // pred_check_branch
      %277 = sbr.rel (0) target = $region37
    $region36: #{tpu_custom_call.1} parent=1 // pred_region
      %278 = dma.done [#allocation4], 256
    $region37: #{tpu_custom_call.1} parent=1 // pred_fallthru
      _
    %279 = vsyncpa [#allocation4], 1

</llo_original>
